<compile_context>
chip_gen: v5e
topology: v5e:2x2
jax: 0.10.0
libtpu: 0.0.40
codegen_flags: <defaults>
</compile_context>

<pallas_src>
import functools

import jax
import jax.numpy as jnp
from jax.experimental import pallas as pl
from jax.experimental.pallas import tpu as pltpu

LANE = 128                      # vreg lane width
SUBLANE = 8                     # f32 sublane packing
ROW_BLOCK = 2048                # rows per grid step -> 1 MiB f32 per operand tile
VMEM_LIMIT = 32 * 1024 * 1024   # explicit scoped-VMEM budget (safe on v5e/v6e/v7x)


def _elem_loss(p, t, loss_type, beta):
    d = p - t
    if loss_type == "norm":
        return jnp.abs(d)
    # smooth L1 (PyTorch smooth_l1_loss semantics, default beta=1.0)
    ad = jnp.abs(d)
    return jnp.where(ad < beta, 0.5 * d * d / beta, ad - 0.5 * beta)


def _none_kernel(pred_ref, tgt_ref, out_ref, *, loss_type, scale, beta):
    p = pred_ref[...].astype(jnp.float32)
    t = tgt_ref[...].astype(jnp.float32)
    out_ref[...] = (_elem_loss(p, t, loss_type, beta) * scale).astype(out_ref.dtype)


def _partial_sum_kernel(pred_ref, tgt_ref, out_ref, *, loss_type, beta,
                        total_rows, block_rows):
    """Emit an (8, 128) per-block partial sum using only VPU adds.

    The final (tiny) cross-lane/sublane reduction of the partials happens
    outside the kernel with jnp.sum, so the grid stays fully 'parallel'
    (megacore-shardable on v7x) and there is no serialized scalar accumulator.
    """
    p = pred_ref[...].astype(jnp.float32)
    t = tgt_ref[...].astype(jnp.float32)
    loss = _elem_loss(p, t, loss_type, beta)

    if total_rows % block_rows != 0:
        # Ragged grid: rows past the valid extent of the (partial) last block
        # hold unspecified data; zero them before reducing.  Static check, so
        # the mask is only emitted when actually needed.
        valid = total_rows - pl.program_id(0) * block_rows
        row_ids = jax.lax.broadcasted_iota(jnp.int32, loss.shape, 0)
        loss = jnp.where(row_ids < valid, loss, 0.0)

    # Fold groups of SUBLANE rows onto each other (pure elementwise VALU adds,
    # no XLU tree-reduce per step).  The reshape is (8,128)-tile aligned, so
    # it is layout-free.  block_rows is always a multiple of 8.
    out_ref[...] = loss.reshape(block_rows // SUBLANE, SUBLANE, LANE).sum(axis=0)


def _as_slab(x):
    """Flatten to a lane-dense (rows, 128) slab, rows a multiple of 8.

    Fast path (element count % (8*128) == 0): pure metadata reshape, no extra
    HBM traffic.  Otherwise zero-pad the flat tail (zeros contribute 0 loss).
    """
    flat = x.reshape(-1)
    n = flat.shape[0]
    rem = n % (SUBLANE * LANE)
    if rem != 0:
        # TODO(synk): the ragged tail could be handled in-kernel with a lane
        # mask instead of this (rare) whole-tensor pad pass.
        flat = jnp.pad(flat, (0, SUBLANE * LANE - rem))
    return flat.reshape(-1, LANE), n, rem != 0


def _make_in_specs(block_rows, nblocks):
    idx = lambda i: (i, 0)
    if nblocks >= 3:
        # Deeper input pipelining for the pure-streaming case.
        spec = pl.BlockSpec((block_rows, LANE), idx, pipeline_mode=pl.Buffered(3))
        return [spec, spec]
    spec = pl.BlockSpec((block_rows, LANE), idx)
    return [spec, spec]


class L1Loss:
    """JAX/Pallas reimplementation of the PyTorch L1Loss module (forward only)."""

    def __init__(self, loss_weight=1.0, reduction="none", loss_type="norm", **kwargs):
        assert reduction in [None, "NONE", "None", "none", "mean", "sum"]
        assert loss_type in ["norm", "smooth"]
        self.reduction = reduction
        self.loss_type = loss_type
        self.loss_weight = float(loss_weight)
        self.beta = float(kwargs.get("beta", 1.0))

    def _is_none(self):
        return self.reduction in [None, "NONE", "None", "none"]

    def __call__(self, pred, target, avg_factor=1.0):
        assert pred.shape[0] == target.shape[0], f"expect {pred.shape} == {target.shape}"
        assert pred.shape == target.shape, "slab layout requires identical shapes"
        # Original module: loss_weight * loss / avg_factor for ALL reductions.
        scale = self.loss_weight / float(avg_factor)

        if pred.shape[0] == 0:
            return jnp.sum(pred) * 0.0
        if pred.size == 0:
            # Degenerate empty tensor (non-zero leading dim): no Pallas launch.
            loss = _elem_loss(pred.astype(jnp.float32), target.astype(jnp.float32),
                              self.loss_type, self.beta)
            if self._is_none():
                return (loss * scale).astype(pred.dtype)
            red = jnp.mean(loss) if self.reduction == "mean" else jnp.sum(loss)
            return (red * scale).astype(pred.dtype)

        pred_slab, n_elems, padded = _as_slab(pred)
        tgt_slab, _, _ = _as_slab(target)
        rows = pred_slab.shape[0]                 # multiple of 8
        block_rows = min(ROW_BLOCK, rows)         # also a multiple of 8
        nblocks = pl.cdiv(rows, block_rows)

        in_specs = _make_in_specs(block_rows, nblocks)
        cparams = pltpu.CompilerParams(
            dimension_semantics=("parallel",),    # megacore-shardable on v7x
            vmem_limit_bytes=VMEM_LIMIT,
        )

        if self._is_none():
            kern = functools.partial(_none_kernel, loss_type=self.loss_type,
                                     scale=scale, beta=self.beta)
            out_slab = pl.pallas_call(
                kern,
                out_shape=jax.ShapeDtypeStruct((rows, LANE), pred.dtype),
                grid_spec=pltpu.PrefetchScalarGridSpec(
                    num_scalar_prefetch=0,
                    grid=(nblocks,),
                    in_specs=in_specs,
                    out_specs=pl.BlockSpec((block_rows, LANE), lambda i: (i, 0)),
                ),
                compiler_params=cparams,
            )(pred_slab, tgt_slab)
            if padded:
                return out_slab.reshape(-1)[:n_elems].reshape(pred.shape)
            return out_slab.reshape(pred.shape)   # free: no pad, no slice

        # 'mean' / 'sum': per-block (8,128) partials, tiny jnp.sum finish outside.
        kern = functools.partial(_partial_sum_kernel, loss_type=self.loss_type,
                                 beta=self.beta, total_rows=rows,
                                 block_rows=block_rows)
        partials = pl.pallas_call(
            kern,
            out_shape=jax.ShapeDtypeStruct((nblocks * SUBLANE, LANE), jnp.float32),
            grid_spec=pltpu.PrefetchScalarGridSpec(
                num_scalar_prefetch=0,
                grid=(nblocks,),
                in_specs=in_specs,
                out_specs=pl.BlockSpec((SUBLANE, LANE), lambda i: (i, 0)),
            ),
            compiler_params=cparams,
        )(pred_slab, tgt_slab)

        total = jnp.sum(partials)                 # a few KiB; negligible
        if self.reduction == "mean":
            total = total / jnp.float32(n_elems)
        return (total * scale).astype(pred.dtype)


if __name__ == "__main__":
    key = jax.random.PRNGKey(0)
    k1, k2, k3, k4 = jax.random.split(key, 4)

    # Small bbox-regression-like inputs: (batch=2, channels=4, spatial=16x16).
    pred = jax.random.normal(k1, (2, 4, 16, 16), dtype=jnp.float32)
    target = jax.random.normal(k2, (2, 4, 16, 16), dtype=jnp.float32)

    loss_none = jax.block_until_ready(
        L1Loss(loss_weight=1.0, reduction="none", loss_type="norm")(pred, target, 1.0))
    loss_mean = jax.block_until_ready(
        L1Loss(loss_weight=2.0, reduction="mean", loss_type="norm")(pred, target, 3.0))
    loss_sum = jax.block_until_ready(
        L1Loss(loss_weight=1.0, reduction="sum", loss_type="smooth")(pred, target, 1.0))

    ref_none = jnp.abs(pred - target)
    assert loss_none.shape == pred.shape
    assert jnp.allclose(loss_none, ref_none, atol=1e-6)
    assert jnp.allclose(loss_mean, 2.0 * jnp.mean(ref_none) / 3.0, atol=1e-5)
    d = pred - target
    ref_smooth = jnp.where(jnp.abs(d) < 1.0, 0.5 * d * d, jnp.abs(d) - 0.5)
    assert jnp.allclose(loss_sum, jnp.sum(ref_smooth), rtol=1e-5)

    # Larger check (~2.4 MB/tensor): exercises the multi-block parallel grid,
    # the ragged-last-block masking, and the deeper input pipelining.
    pred_l = jax.random.normal(k3, (3, 4, 224, 224), dtype=jnp.float32)
    target_l = jax.random.normal(k4, (3, 4, 224, 224), dtype=jnp.float32)
    ref_l = jnp.abs(pred_l - target_l)
    sum_l = jax.block_until_ready(
        L1Loss(loss_weight=1.0, reduction="sum", loss_type="norm")(pred_l, target_l, 1.0))
    none_l = jax.block_until_ready(
        L1Loss(loss_weight=1.0, reduction="none", loss_type="norm")(pred_l, target_l, 1.0))
    assert jnp.allclose(sum_l, jnp.sum(ref_l), rtol=1e-5)
    assert jnp.allclose(none_l, ref_l, atol=1e-6)

    print("KERNEL_OK")
</pallas_src>

<mosaic_0001>
module attributes {stable_mosaic.version = 11 : i64} {
  func.func @_none_kernel(%arg0: i32, %arg1: memref<16x128xf32, #tpu.memory_space<vmem>>, %arg2: memref<16x128xf32, #tpu.memory_space<vmem>>, %arg3: memref<16x128xf32, #tpu.memory_space<vmem>>) attributes {dimension_semantics = [#tpu.dimension_semantics<parallel>], iteration_bounds = array<i64: 1>, scalar_prefetch = 0 : i64, scratch_operands = 0 : i64, tpu.core_type = #tpu.core_type<tc>, window_params = [{transform_indices = @transform_0, window_bounds = array<i64: 16, 128>}, {transform_indices = @transform_1, window_bounds = array<i64: 16, 128>}, {transform_indices = @transform_2, window_bounds = array<i64: 16, 128>}]} {
    %c0 = arith.constant 0 : index
    %c0_0 = arith.constant 0 : index
    %0 = vector.load %arg1[%c0, %c0_0] : memref<16x128xf32, #tpu.memory_space<vmem>>, vector<16x128xf32>
    %c0_1 = arith.constant 0 : index
    %c0_2 = arith.constant 0 : index
    %1 = vector.load %arg2[%c0_1, %c0_2] : memref<16x128xf32, #tpu.memory_space<vmem>>, vector<16x128xf32>
    %2 = arith.subf %0, %1 : vector<16x128xf32>
    %3 = math.absf %2 : vector<16x128xf32>
    %cst = arith.constant 1.000000e+00 : f32
    %4 = vector.broadcast %cst : f32 to vector<16x128xf32>
    %5 = arith.mulf %3, %4 : vector<16x128xf32>
    %c0_3 = arith.constant 0 : index
    %c0_4 = arith.constant 0 : index
    %6 = vector.load %arg3[%c0_3, %c0_4] : memref<16x128xf32, #tpu.memory_space<vmem>>, vector<16x128xf32>
    tpu.vector_store %arg3[%c0_3, %c0_4], %5 {strides = array<i32>} : memref<16x128xf32, #tpu.memory_space<vmem>>, vector<16x128xf32>,
    return
  }
  func.func @transform_0(%arg0: i32) -> (i32, i32) {
    %c0_i32 = arith.constant 0 : i32
    %c0_i32_0 = arith.constant 0 : i32
    return %arg0, %c0_i32 : i32, i32
  }
  func.func @transform_1(%arg0: i32) -> (i32, i32) {
    %c0_i32 = arith.constant 0 : i32
    %c0_i32_0 = arith.constant 0 : i32
    return %arg0, %c0_i32 : i32, i32
  }
  func.func @transform_2(%arg0: i32) -> (i32, i32) {
    %c0_i32 = arith.constant 0 : i32
    %c0_i32_0 = arith.constant 0 : i32
    return %arg0, %c0_i32 : i32, i32
  }
}

</mosaic_0001>

<llo_original>
// kernel: tpu_custom_call.1
$region0: #{tpu_custom_call.1}
  #allocation0 [shape = 'u32[]', space=smem, size = 0x4, offset = 0x4, fixed_abs, tag = 'smem constant byte address 0x4 - core index']
  #allocation1 [shape = 'u32[72,128]{1,0:T(1,128)}', space=vmem, size = 0x9000, scoped, tag = 'internal scratch']
  %s0 = inlined_call_operand.hbm [shape: f32[16,128], index: 0, kind: input, shape index: {}]
  %s1 = inlined_call_operand.hbm [shape: f32[16,128], index: 1, kind: input, shape index: {}]
  %s2 = inlined_call_operand.hbm [shape: f32[16,128], index: 2, kind: output, shape index: {}]
  %s3 = sld [smem:[#allocation0]]
  $region26: #{tpu_custom_call.1} parent=0
    _
  %s5 = ssub.s32 1, %s3
  %s6 = scalar_select 0, %s5, %s3
  $region1: #{tpu_custom_call.1} parent=0
    #allocation2 [shape = 'u8[8192]{0}', space=vmem, size = 0x2000, scoped, tag = 'input window, operand 0, single buffered']
    #allocation3 [shape = 's32[1]{0}', space=sflag, size = 0x4, scoped, tag = 'scoped memory for tpu_custom_call.1']
    #allocation4 [shape = 's32[1]{0}', space=sflag, size = 0x4, scoped, tag = 'scoped memory for tpu_custom_call.1']
    #allocation5 [shape = 'u8[8192]{0}', space=vmem, size = 0x2000, scoped, tag = 'input window, operand 1, single buffered']
    #allocation6 [shape = 's32[1]{0}', space=sflag, size = 0x4, scoped, tag = 'scoped memory for tpu_custom_call.1']
    #allocation7 [shape = 'u8[8192]{0}', space=vmem, size = 0x2000, scoped, tag = 'output window, operand 0, single buffered']
    %7 = vsyncpa [#allocation3], 0
    %8 = vsyncpa [#allocation6], 0
    %9 = vsyncpa [#allocation4], 0
    // Predicated region
    $region2: #{tpu_custom_call.1} parent=1 // pred_check
      _
    $region3: #{tpu_custom_call.1} parent=1 // pred_check_branch
      %11 = sbr.rel (0) target = $region5
    $region4: #{tpu_custom_call.1} parent=1 // pred_region
      %13 = vsyncadd [#allocation3], 0
      %s14 = sshll.u32 %s0, 4
      %s15 = int_to_ptr.hbm [resolvable:$true] %s14
      %s16 = sshll.u32 [#allocation2], 4
      %s17 = int_to_ptr.vmem [resolvable:$true] %s16
      %22 = dma.hbm_to_vmem [thread:$0]  %s15, 256, %s17, [#allocation3], 128, 128, 8
    $region5: #{tpu_custom_call.1} parent=1 // pred_fallthru
      _
    // Predicated region
    $region6: #{tpu_custom_call.1} parent=1 // pred_check
      _
    $region7: #{tpu_custom_call.1} parent=1 // pred_check_branch
      %24 = sbr.rel (0) target = $region9
    $region8: #{tpu_custom_call.1} parent=1 // pred_region
      %26 = vsyncadd [#allocation6], 0
      %s27 = sshll.u32 %s1, 4
      %s28 = int_to_ptr.hbm [resolvable:$true] %s27
      %s29 = sshll.u32 [#allocation5], 4
      %s30 = int_to_ptr.vmem [resolvable:$true] %s29
      %35 = dma.hbm_to_vmem [thread:$0]  %s28, 256, %s30, [#allocation6], 128, 128, 8
    $region9: #{tpu_custom_call.1} parent=1 // pred_fallthru
      _
    // Predicated region
    $region10: #{tpu_custom_call.1} parent=1 // pred_check
      _
    $region11: #{tpu_custom_call.1} parent=1 // pred_check_branch
      %37 = sbr.rel (0) target = $region13
    $region12: #{tpu_custom_call.1} parent=1 // pred_region
      %39 = dma.done [#allocation3], 256
    $region13: #{tpu_custom_call.1} parent=1 // pred_fallthru
      _
    // Predicated region
    $region14: #{tpu_custom_call.1} parent=1 // pred_check
      _
    $region15: #{tpu_custom_call.1} parent=1 // pred_check_branch
      %41 = sbr.rel (0) target = $region17
    $region16: #{tpu_custom_call.1} parent=1 // pred_region
      %43 = dma.done [#allocation6], 256
    $region17: #{tpu_custom_call.1} parent=1 // pred_fallthru
      _
    %v44 = vld [vmem:[#allocation2] sm:$0xff]
    %v45 = vld [vmem:[#allocation2 + $0x8] sm:$0xff]
    %v46 = vld [vmem:[#allocation5] sm:$0xff]
    %v47 = vld [vmem:[#allocation5 + $0x8] sm:$0xff]
    %v48 = vsub.f32 %v44, %v46
    %v49 = vsub.f32 %v45, %v47
    %v50 = vand.u32 2147483647, %v48
    %v51 = vand.u32 2147483647, %v49
    %52 = vst [vmem:[#allocation7] sm:$0xff] %v50
    %53 = vst [vmem:[#allocation7 + $0x8] sm:$0xff] %v51
    // Predicated region
    $region18: #{tpu_custom_call.1} parent=1 // pred_check
      _
    $region19: #{tpu_custom_call.1} parent=1 // pred_check_branch
      %55 = sbr.rel (0) target = $region21
    $region20: #{tpu_custom_call.1} parent=1 // pred_region
      %57 = vsyncadd [#allocation4], 0
      %s58 = sshll.u32 [#allocation7], 4
      %s59 = int_to_ptr.vmem [resolvable:$true] %s58
      %s60 = sshll.u32 %s2, 4
      %s61 = int_to_ptr.hbm [resolvable:$true] %s60
      %66 = dma.vmem_to_hbm [thread:$0]  %s59, 256, %s61, [#allocation4], 128, 128, 8
    $region21: #{tpu_custom_call.1} parent=1 // pred_fallthru
      _
    // Predicated region
    $region22: #{tpu_custom_call.1} parent=1 // pred_check
      _
    $region23: #{tpu_custom_call.1} parent=1 // pred_check_branch
      %68 = sbr.rel (0) target = $region25
    $region24: #{tpu_custom_call.1} parent=1 // pred_region
      %70 = dma.done [#allocation4], 256
    $region25: #{tpu_custom_call.1} parent=1 // pred_fallthru
      _
    %71 = vsyncpa [#allocation3], 1
    %72 = vsyncpa [#allocation6], 1
    %73 = vsyncpa [#allocation4], 1

</llo_original>
